<compile_context>
chip_gen: v7x
topology: tpu7x:2x2x1
jax: 0.10.0
libtpu: 0.0.40
codegen_flags: <defaults>
</compile_context>

<pallas_src>
import functools

import jax
import jax.numpy as jnp
from jax import lax
from jax.experimental import pallas as pl
from jax.experimental.pallas import tpu as pltpu

_LANES = 128


def _alpha_loss_kernel(x_ref, out_ref, *, clamp_alpha: float,
                       force_opaque: bool, edge_rows):
    """One (tile_rows, 128) tile -> one lane-dense (8, 128) partial sum."""
    a = jnp.clip(x_ref[...].astype(jnp.float32), 0.01, 0.99)

    if force_opaque:
        # BCELoss(alpha, ones) per element = -log(alpha)
        per = -jnp.log(a)
    else:
        # log(a) + log(1-a) fused into one EUP transcendental (exact for the
        # clipped range [0.01, 0.99]).
        per = jnp.maximum(jnp.log(a * (1.0 - a)), jnp.float32(-clamp_alpha))

    def _partial(p):
        # (T, 128) -> (T//8, 8, 128) regroup is layout-free; the axis-0 sum is
        # pure VALU vreg adds (no sublane XLU reduce, unmasked (8,128) store).
        return jnp.sum(p.reshape(p.shape[0] // 8, 8, _LANES), axis=0)

    if edge_rows is None:
        # Common case: rows divide the tile evenly -> zero masking work.
        out_ref[0] = _partial(per)
    else:
        i = pl.program_id(0)
        last = pl.num_programs(0) - 1

        @pl.when(i != last)
        def _():
            out_ref[0] = _partial(per)

        @pl.when(i == last)
        def _():
            # Only the edge block pays for the mask; rows past `edge_rows` are
            # garbage from the partial DMA and are selected away (NaNs included).
            row = lax.broadcasted_iota(jnp.int32, per.shape, 0)
            out_ref[0] = _partial(jnp.where(row < edge_rows, per, 0.0))


def alpha_loss_nv2(alpha_fine, *, lambda_alpha: float, clamp_alpha: float,
                   epoch: int, init_epoch: int, force_opaque: bool = False,
                   max_tile_rows: int = 8192):
    """Functional equivalent of AlphaLossNV2.forward (epoch passed explicitly)."""
    if not (lambda_alpha > 0.0 and epoch >= init_epoch):
        # Inactive branch of the module.
        return jnp.zeros((), dtype=jnp.float32)

    flat = jnp.reshape(alpha_fine, (-1,))
    n = flat.shape[0]
    itemsize = jnp.dtype(alpha_fine.dtype).itemsize
    align = {4: 8, 2: 16, 1: 32}.get(itemsize, 8)   # sublane packing granule

    def _elem_loss(v):
        v = jnp.clip(v.astype(jnp.float32), 0.01, 0.99)
        if force_opaque:
            return -jnp.log(v)
        return jnp.maximum(jnp.log(v * (1.0 - v)), jnp.float32(-clamp_alpha))

    rows = n // _LANES
    if rows < align:
        # Tiny input (< ~align*128 elems): plain jnp, not worth a kernel launch.
        return jnp.sum(_elem_loss(flat)) * jnp.float32(lambda_alpha / n)

    # ---- blocking: big balanced tiles, >=2 (even) blocks for the v7x 2-TC split
    if rows >= 2 * align:
        num_blocks = max(2, -(-rows // max_tile_rows))
        num_blocks += num_blocks & 1
    else:
        num_blocks = 1
    tile_rows = max(align, (rows // num_blocks) // align * align)  # mult of align, <= rows
    grid = -(-rows // tile_rows)
    edge = rows % tile_rows
    edge_rows = None if edge == 0 else edge

    n_main = rows * _LANES
    # Lane-dense 2-D view. The prefix slice is a no-op when n % 128 == 0; only
    # truly ragged inputs pay one prefix copy (no full-array jnp.pad anywhere).
    x2d = flat[:n_main].reshape(rows, _LANES)

    kernel = functools.partial(
        _alpha_loss_kernel, clamp_alpha=float(clamp_alpha),
        force_opaque=bool(force_opaque), edge_rows=edge_rows)

    partials = pl.pallas_call(
        kernel,
        out_shape=jax.ShapeDtypeStruct((grid, 8, _LANES), jnp.float32),
        grid_spec=pl.GridSpec(
            grid=(grid,),
            in_specs=[pl.BlockSpec((tile_rows, _LANES), lambda i: (i, 0))],
            out_specs=pl.BlockSpec((1, 8, _LANES), lambda i: (i, 0, 0)),
        ),
        compiler_params=pltpu.CompilerParams(
            dimension_semantics=("parallel",)),      # independent partial sums
        cost_estimate=pl.CostEstimate(
            flops=5 * n_main,
            transcendentals=n_main,
            bytes_accessed=n_main * itemsize + grid * 8 * _LANES * 4),
    )(x2d)

    total = jnp.sum(partials)
    if n_main != n:
        # <128-element lane tail folded in plain jnp (tiny).
        total = total + jnp.sum(_elem_loss(flat[n_main:]))

    # Fold the mean and lambda_alpha into a single scalar multiply.
    return total * jnp.float32(lambda_alpha / n)


def _reference(alpha_fine, lambda_alpha, clamp_alpha, epoch, init_epoch,
               force_opaque=False):
    if lambda_alpha > 0.0 and epoch >= init_epoch:
        a = jnp.clip(alpha_fine.astype(jnp.float32), 0.01, 0.99)
        if force_opaque:
            loss = lambda_alpha * jnp.mean(-jnp.log(a))
        else:
            l = jnp.log(a) + jnp.log(1.0 - a)
            l = jnp.maximum(l, -clamp_alpha)
            loss = lambda_alpha * jnp.mean(l)
    else:
        loss = jnp.zeros((), dtype=jnp.float32)
    return loss


if __name__ == "__main__":
    key = jax.random.PRNGKey(0)
    k1, k2, k3, k4, k5, k6 = jax.random.split(key, 6)

    lambda_alpha = 0.1
    clamp_alpha = 3.0
    init_epoch = 0
    epoch = 1

    def check(x, ref_x, *, force_opaque=False, max_tile_rows=8192, tol=2e-5,
              ep=epoch, ie=init_epoch):
        out = alpha_loss_nv2(x, lambda_alpha=lambda_alpha,
                             clamp_alpha=clamp_alpha, epoch=ep, init_epoch=ie,
                             force_opaque=force_opaque,
                             max_tile_rows=max_tile_rows)
        jax.block_until_ready(out)
        ref = _reference(ref_x, lambda_alpha, clamp_alpha, ep, ie,
                         force_opaque=force_opaque)
        return bool(jnp.allclose(out, ref, rtol=tol, atol=tol))

    ok = True

    # 1) Module-typical shape, 128-divisible (no copies, no mask), 2 blocks.
    a1 = jax.random.uniform(k1, (2, 4, 16, 16), dtype=jnp.float32)
    ok &= check(a1, a1)

    # 2) Tiny ragged size (wrapper jnp fallback path).
    a2 = jax.random.uniform(k2, (3, 5, 7), dtype=jnp.float32)
    ok &= check(a2, a2)

    # 3) Multi-block grid + force_opaque (BCE-with-ones) path.
    a3 = jax.random.uniform(k3, (64, 128), dtype=jnp.float32)
    ok &= check(a3, a3, force_opaque=True, max_tile_rows=16)

    # 4) Partial edge block (rows % tile_rows != 0), masked last block.
    a4 = jax.random.uniform(k4, (37, 128), dtype=jnp.float32)
    ok &= check(a4, a4)

    # 5) Ragged lanes + ragged rows: kernel prefix + edge mask + jnp lane tail.
    a5 = jax.random.uniform(k5, (3, 41, 40), dtype=jnp.float32)
    ok &= check(a5, a5)

    # 6) bf16 input fed directly (16-row alignment, per-tile upcast).
    a6 = jax.random.uniform(k6, (128, 256), dtype=jnp.float32).astype(jnp.bfloat16)
    ok &= check(a6, a6, tol=1e-4)

    # 7) Inactive branch (epoch < init_epoch) -> zero, no kernel launch.
    out7 = alpha_loss_nv2(a1, lambda_alpha=lambda_alpha,
                          clamp_alpha=clamp_alpha, epoch=0, init_epoch=5)
    ok &= bool(jnp.allclose(out7, 0.0))

    assert ok, "AlphaLossNV2 Pallas kernel mismatch vs. reference"
    print("KERNEL_OK")
</pallas_src>

<mosaic_0001>
module attributes {stable_mosaic.version = 11 : i64} {
  func.func @_alpha_loss_kernel(%arg0: i32, %arg1: memref<8x128xf32, #tpu.memory_space<vmem>>, %arg2: memref<1x8x128xf32, #tpu.memory_space<vmem>>) attributes {dimension_semantics = [#tpu.dimension_semantics<parallel>], iteration_bounds = array<i64: 2>, scalar_prefetch = 0 : i64, scratch_operands = 0 : i64, tpu.core_type = #tpu.core_type<tc>, window_params = [{transform_indices = @transform_0, window_bounds = array<i64: 8, 128>}, {transform_indices = @transform_1, window_bounds = array<i64: 1, 8, 128>}]} {
    %c0 = arith.constant 0 : index
    %c0_0 = arith.constant 0 : index
    %0 = vector.load %arg1[%c0, %c0_0] : memref<8x128xf32, #tpu.memory_space<vmem>>, vector<8x128xf32>
    %cst = arith.constant 0.00999999977 : f32
    %cst_1 = arith.constant 9.900000e-01 : f32
    %1 = vector.broadcast %cst : f32 to vector<8x128xf32>
    %2 = arith.maximumf %1, %0 : vector<8x128xf32>
    %3 = vector.broadcast %cst_1 : f32 to vector<8x128xf32>
    %4 = arith.minimumf %3, %2 : vector<8x128xf32>
    %cst_2 = arith.constant 1.000000e+00 : f32
    %5 = vector.broadcast %cst_2 : f32 to vector<8x128xf32>
    %6 = arith.subf %5, %4 : vector<8x128xf32>
    %7 = arith.mulf %4, %6 : vector<8x128xf32>
    %8 = math.log %7 : vector<8x128xf32>
    %cst_3 = arith.constant -3.000000e+00 : f32
    %9 = vector.broadcast %cst_3 : f32 to vector<8x128xf32>
    %10 = arith.maximumf %8, %9 : vector<8x128xf32>
    %11 = vector.shape_cast %10 : vector<8x128xf32> to vector<1x8x128xf32>
    %cst_4 = arith.constant dense<0.000000e+00> : vector<8x128xf32>
    %12 = vector.multi_reduction <add>, %11, %cst_4 [0] : vector<1x8x128xf32> to vector<8x128xf32>
    %c0_5 = arith.constant 0 : index
    %c0_6 = arith.constant 0 : index
    %c0_7 = arith.constant 0 : index
    %13 = vector.load %arg2[%c0_5, %c0_6, %c0_7] : memref<1x8x128xf32, #tpu.memory_space<vmem>>, vector<1x8x128xf32>
    %14 = vector.shape_cast %13 : vector<1x8x128xf32> to vector<8x128xf32>
    %15 = vector.shape_cast %12 : vector<8x128xf32> to vector<1x8x128xf32>
    tpu.vector_store %arg2[%c0_5, %c0_6, %c0_7], %15 {strides = array<i32>} : memref<1x8x128xf32, #tpu.memory_space<vmem>>, vector<1x8x128xf32>,
    return
  }
  func.func @transform_0(%arg0: i32) -> (i32, i32) {
    %c0_i32 = arith.constant 0 : i32
    %c0_i32_0 = arith.constant 0 : i32
    return %arg0, %c0_i32 : i32, i32
  }
  func.func @transform_1(%arg0: i32) -> (i32, i32, i32) {
    %c0_i32 = arith.constant 0 : i32
    %c0_i32_0 = arith.constant 0 : i32
    %c0_i32_1 = arith.constant 0 : i32
    return %arg0, %c0_i32, %c0_i32_0 : i32, i32, i32
  }
}

</mosaic_0001>

<llo_original>
// kernel: tpu_custom_call.1
$region0: #{tpu_custom_call.1}
  #allocation0 [shape = 'u32[]', space=smem, size = 0x4, offset = 0x4, fixed_abs, tag = 'smem constant byte address 0x4 - core index']
  #allocation1 [shape = 'u32[144,128]{1,0:T(1,128)}', space=vmem, size = 0x12000, scoped, tag = 'internal scratch']
  %s0 = inlined_call_operand.hbm [shape: f32[16,128], index: 0, kind: input, shape index: {}]
  %s1 = inlined_call_operand.hbm [shape: f32[2,8,128], index: 1, kind: output, shape index: {}]
  %s2 = sld [smem:[#allocation0]]
  $region41: #{tpu_custom_call.1} parent=0
    _
  %s4 = ssub.s32 1, %s2
  %s5 = scalar_select 0, %s4, %s2
  $region1: #{tpu_custom_call.1} parent=0
    #allocation2 [shape = 'u8[8192]{0}', space=vmem, size = 0x2000, scoped, tag = 'input window, operand 0']
    #allocation3 [shape = 's32[2]{0}', space=sflag, size = 0x8, scoped, tag = 'scoped memory for tpu_custom_call.1']
    #allocation4 [shape = 's32[2]{0}', space=sflag, size = 0x8, scoped, tag = 'scoped memory for tpu_custom_call.1']
    #allocation5 [shape = 'u8[8192]{0}', space=vmem, size = 0x2000, scoped, tag = 'output window, operand 0']
    %6 = vsyncpa [#allocation3], 0
    %s7 = scalar_lea.sflag [#allocation3], 1
    %8 = vsyncpa %s7, 0
    %9 = vsyncpa [#allocation4], 0
    %s10 = scalar_lea.sflag [#allocation4], 1
    %11 = vsyncpa %s10, 0
    loop: start=0, step=1, limit=4
    $region2: #{tpu_custom_call.1} parent=1 // loop_pre_header
      _
    $region3: #{tpu_custom_call.1} parent=1 // loop_header
      %s13 = sphi 0, %s17
      %p14 = scmp.ge.s32.totalorder %s13, 4
      %s23 = sphi 0, %s25
      %s26 = sphi 0, %s23
      %s27 = sphi 0, %s26
      %s43 = sphi 0, %s27
      %s49 = sphi 0, %s51
      %s52 = sphi 0, %s49
      %s53 = sphi 0, %s52
      %s69 = sphi 0, %s53
    $region4: #{tpu_custom_call.1} parent=1 // loop_header_branch
      %16 = sbr.rel (%p14) target = $region8
    $region5: #{tpu_custom_call.1} parent=1 // loop_body
      %s18 = ssub.s32 %s13, 1
      %s19 = ssub.s32 %s13, 2
      %s20 = sadd.s32 %s13, 1
      %s21 = ssub.s32 %s13, %s20
      %p22 = scmp.eq.s32.totalorder %s21, 0
      %s24 = sadd.s32 %s23, 1
      %s25 = scalar_select %p22, %s23, %s24
      %p28 = pneg %p22
      %p29 = scmp.eq.s32.totalorder %s13, 1
      %p30 = por %p28, %p29
      %p31 = scmp.ne.s32.totalorder %s23, %s26
      %p32 = scmp.eq.s32.totalorder %s13, 0
      %p33 = por %p31, %p32
      %p34 = scmp.ne.s32.totalorder %s23, %s26
      %p35 = scmp.eq.s32.totalorder %s18, 1
      %p36 = por %p34, %p35
      %p37 = scmp.ne.s32.totalorder %s26, %s27
      %p38 = scmp.eq.s32.totalorder %s18, 0
      %p39 = por %p37, %p38
      %p40 = scmp.ne.s32.totalorder %s26, %s27
      %p41 = scmp.eq.s32.totalorder %s19, 1
      %p42 = por %p40, %p41
      %p44 = scmp.ne.s32.totalorder %s27, %s43
      %p45 = scmp.eq.s32.totalorder %s19, 0
      %p46 = por %p44, %p45
      %s47 = ssub.s32 %s13, %s20
      %p48 = scmp.eq.s32.totalorder %s47, 0
      %s50 = sadd.s32 %s49, 1
      %s51 = scalar_select %p48, %s49, %s50
      %p54 = pneg %p48
      %p55 = scmp.eq.s32.totalorder %s13, 1
      %p56 = por %p54, %p55
      %p57 = scmp.ne.s32.totalorder %s49, %s52
      %p58 = scmp.eq.s32.totalorder %s13, 0
      %p59 = por %p57, %p58
      %p60 = scmp.ne.s32.totalorder %s49, %s52
      %p61 = scmp.eq.s32.totalorder %s18, 1
      %p62 = por %p60, %p61
      %p63 = scmp.ne.s32.totalorder %s52, %s53
      %p64 = scmp.eq.s32.totalorder %s18, 0
      %p65 = por %p63, %p64
      %p66 = scmp.ne.s32.totalorder %s52, %s53
      %p67 = scmp.eq.s32.totalorder %s19, 1
      %p68 = por %p66, %p67
      %p70 = scmp.ne.s32.totalorder %s53, %s69
      %p71 = scmp.eq.s32.totalorder %s19, 0
      %p72 = por %p70, %p71
      %p73 = scmp.le.s32.totalorder 1, %s13
      %p74 = scmp.lt.s32.totalorder %s13, 3
      %p75 = pnand %p73, %p74
      %p76 = pneg %p75
      // Predicated region
      $region9: #{tpu_custom_call.1} parent=5 // pred_check
        _
      $region10: #{tpu_custom_call.1} parent=5 // pred_check_branch
        %78 = sbr.rel (%p75) target = $region12
      $region11: #{tpu_custom_call.1} parent=5 // pred_region
        %s79 = ssub.s32 %s13, 1
      $region12: #{tpu_custom_call.1} parent=5 // pred_fallthru
        _
      %p80 = scmp.lt.s32.totalorder %s13, 2
      // Predicated region
      $region13: #{tpu_custom_call.1} parent=5 // pred_check
        %p81 = pneg %p80
      $region14: #{tpu_custom_call.1} parent=5 // pred_check_branch
        %83 = sbr.rel (%p81) target = $region16
      $region15: #{tpu_custom_call.1} parent=5 // pred_region
        // Predicated region
        $region17: #{tpu_custom_call.1} parent=15 // pred_check
          %p84 = pneg %p33
        $region18: #{tpu_custom_call.1} parent=15 // pred_check_branch
          %86 = sbr.rel (%p84) target = $region20
        $region19: #{tpu_custom_call.1} parent=15 // pred_region
          %s87 = sand.u32 %s23, 1
          %s88 = scalar_lea.sflag [#allocation3], %s87
          %s89 = sand.u32 %s23, 1
          %s90 = smul.addr %s89, 8
          %s91 = scalar_lea.vmem [#allocation2], %s90
          %s93 = ssub.s32 128, 128
          %94 = vsyncadd %s88, %s93
          %s95 = smul.addr %s13, 128
          %s96 = scalar_lea.hbm %s0, %s95
          %s98 = sshll.u32 %s91, 4
          %s99 = int_to_ptr.vmem [resolvable:$true] %s98
          %101 = dma.hbm_to_vmem [thread:$0]  %s96, 128, %s99, %s88
        $region20: #{tpu_custom_call.1} parent=15 // pred_fallthru
          _
      $region16: #{tpu_custom_call.1} parent=5 // pred_fallthru
        _
      %p102 = scmp.le.s32.totalorder 1, %s13
      %p103 = scmp.lt.s32.totalorder %s13, 3
      %p104 = pnand %p102, %p103
      %p105 = pneg %p104
      // Predicated region
      $region21: #{tpu_custom_call.1} parent=5 // pred_check
        _
      $region22: #{tpu_custom_call.1} parent=5 // pred_check_branch
        %107 = sbr.rel (%p104) target = $region24
      $region23: #{tpu_custom_call.1} parent=5 // pred_region
        %s108 = ssub.s32 %s13, 1
        %s109 = sand.u32 %s26, 1
        %s110 = scalar_lea.sflag [#allocation3], %s109
        %s111 = sand.u32 %s26, 1
        %s112 = smul.addr %s111, 8
        %s113 = scalar_lea.vmem [#allocation2], %s112
        // Predicated region
        $region25: #{tpu_custom_call.1} parent=23 // pred_check
          %p114 = pneg %p39
        $region26: #{tpu_custom_call.1} parent=23 // pred_check_branch
          %116 = sbr.rel (%p114) target = $region28
        $region27: #{tpu_custom_call.1} parent=23 // pred_region
          %117 = dma.done %s110, 128
        $region28: #{tpu_custom_call.1} parent=23 // pred_fallthru
          _
        %s118 = sand.u32 %s26, 1
        %s119 = scalar_lea.sflag [#allocation3], %s118
        %s120 = sand.u32 %s26, 1
        %s121 = smul.addr %s120, 8
        %s122 = scalar_lea.vmem [#allocation2], %s121
        %p123 = pneg %p39
        %p124 = pneg %p36
        %p125 = pneg %p65
        %p126 = pneg %p62
        %s127 = sand.u32 %s52, 1
        %s128 = scalar_lea.sflag [#allocation4], %s127
        %s129 = sand.u32 %s52, 1
        %s130 = smul.addr %s129, 8
        %s131 = scalar_lea.vmem [#allocation5], %s130
        %v132 = vld [vmem:[%s113] sm:$0xff]
        %v133 = vmax.f32 %v132, 0.01
        %v134 = vmin.f32 %v133, 0.99
        %v135 = vsub.f32 1.0, %v134
        %v136 = vmul.f32 %v134, %v135
        %v137 = vlog2.pop %v136
        %v138 = vmul.f32 %v137, 0.6931472
        %v139 = vmax.f32 %v138, -3.0
        %v140 = vadd.f32 %v139, 0.0
        %141 = vst [vmem:[%s131] sm:$0xff] %v140
        %s142 = sand.u32 %s52, 1
        %s143 = scalar_lea.sflag [#allocation4], %s142
        %s144 = sand.u32 %s52, 1
        %s145 = smul.addr %s144, 8
        %s146 = scalar_lea.vmem [#allocation5], %s145
        // Predicated region
        $region29: #{tpu_custom_call.1} parent=23 // pred_check
          %p147 = pneg %p62
        $region30: #{tpu_custom_call.1} parent=23 // pred_check_branch
          %149 = sbr.rel (%p147) target = $region32
        $region31: #{tpu_custom_call.1} parent=23 // pred_region
          %s151 = ssub.s32 128, 128
          %152 = vsyncadd %s143, %s151
          %s153 = smul.addr %s18, 128
          %s154 = scalar_lea.hbm %s1, %s153
          %s156 = sshll.u32 %s146, 4
          %s157 = int_to_ptr.vmem [resolvable:$true] %s156
          %159 = dma.vmem_to_hbm [thread:$0]  %s157, 128, %s154, %s143
        $region32: #{tpu_custom_call.1} parent=23 // pred_fallthru
          _
      $region24: #{tpu_custom_call.1} parent=5 // pred_fallthru
        _
      %p160 = scmp.le.s32.totalorder 2, %s13
      // Predicated region
      $region33: #{tpu_custom_call.1} parent=5 // pred_check
        %p161 = pneg %p160
      $region34: #{tpu_custom_call.1} parent=5 // pred_check_branch
        %163 = sbr.rel (%p161) target = $region36
      $region35: #{tpu_custom_call.1} parent=5 // pred_region
        %s164 = ssub.s32 %s13, 2
        // Predicated region
        $region37: #{tpu_custom_call.1} parent=35 // pred_check
          %p165 = pneg %p68
        $region38: #{tpu_custom_call.1} parent=35 // pred_check_branch
          %167 = sbr.rel (%p165) target = $region40
        $region39: #{tpu_custom_call.1} parent=35 // pred_region
          %s168 = sand.u32 %s53, 1
          %s169 = scalar_lea.sflag [#allocation4], %s168
          %s170 = sand.u32 %s53, 1
          %s171 = smul.addr %s170, 8
          %s172 = scalar_lea.vmem [#allocation5], %s171
          %173 = dma.done %s169, 128
        $region40: #{tpu_custom_call.1} parent=35 // pred_fallthru
          _
      $region36: #{tpu_custom_call.1} parent=5 // pred_fallthru
        _
    $region6: #{tpu_custom_call.1} parent=1 // loop_footer
      %s17 = sadd.s32 1, %s13
    $region7: #{tpu_custom_call.1} parent=1 // loop_footer_branch
      %12 = sbr.rel target = $region3
    $region8: #{tpu_custom_call.1} parent=1 // loop_exit
      _
    %174 = vsyncpa [#allocation3], 1
    %s175 = scalar_lea.sflag [#allocation3], 1
    %176 = vsyncpa %s175, 1
    %177 = vsyncpa [#allocation4], 1
    %s178 = scalar_lea.sflag [#allocation4], 1
    %179 = vsyncpa %s178, 1

</llo_original>
